<compile_context>
chip_gen: v5e
topology: v5e:2x2
jax: 0.10.0
libtpu: 0.0.40
codegen_flags: <defaults>
</compile_context>

<pallas_src>
import functools

import jax
import jax.numpy as jnp
from jax.experimental import pallas as pl
from jax.experimental.pallas import tpu as pltpu


def _cdiv(a, b):
    return (a + b - 1) // b


def _round_up(a, b):
    return _cdiv(a, b) * b


# ----------------------------- Pallas kernel ------------------------------

def _dssm_two_tower_kernel(n_layers, matmul_dtype, u_ref, i_ref, *rest):
    """Both towers + interaction + sigmoid for one batch tile.

    rest = [Wu0, bu0, ..., Wu{L-1}, bu{L-1},
            Wi0, bi0, ..., Wi{L-1}, bi{L-1}, out_ref]
      u_ref : (TB, Du) streamed activations (f32 from the embedding gather)
      i_ref : (TB, Di)
      W     : (din, dout) matmul_dtype, VMEM-resident (constant index_map)
      b     : (1, dout)   f32
      out   : (TB, 1)     f32 score column
    """
    out_ref = rest[-1]
    params = rest[:-1]
    user_ps = params[:2 * n_layers]
    item_ps = params[2 * n_layers:]

    def tower(x, ps):
        h = x.astype(matmul_dtype)                      # narrow MXU operand
        for l in range(n_layers):
            w = ps[2 * l][...]                          # (din_l, dout_l)
            b = ps[2 * l + 1][...]                      # (1, dout_l) f32
            z = jnp.dot(h, w, preferred_element_type=jnp.float32) + b
            a = jnp.tanh(z)                             # f32 elementwise
            # dropout is an eval-mode no-op.
            h = a if l == n_layers - 1 else a.astype(matmul_dtype)
        return h                                        # (TB, H) f32

    u = tower(u_ref[...], user_ps)
    it = tower(i_ref[...], item_ps)
    # score = sigmoid(sum(u * i, axis=1)); row-local reduce, stored as a column.
    s = jnp.sum(u * it, axis=1, keepdims=True)          # (TB, 1) f32
    out_ref[...] = jax.nn.sigmoid(s)


# ------------------------------ host wrapper -------------------------------

def dssm_score_pallas(user_emb, item_emb, user_params, item_params,
                      *, tb=8192, matmul_dtype=jnp.bfloat16):
    """user_emb: (B, Du), item_emb: (B, Di); *_params: list of (W, b) per layer."""
    B, du = user_emb.shape
    bi, di = item_emb.shape
    assert bi == B
    n_layers = len(user_params)
    assert len(item_params) == n_layers and n_layers >= 1
    assert user_params[-1][0].shape[1] == item_params[-1][0].shape[1]

    # --- parameters: weights in the MXU operand dtype, biases as (1, H) f32 --
    flat_params = []
    for w, b in list(user_params) + list(item_params):
        flat_params.append(jnp.asarray(w, jnp.float32).astype(matmul_dtype))
        flat_params.append(jnp.asarray(b, jnp.float32).reshape(1, -1))

    # --- batch tile selection --------------------------------------------------
    #  * B <= 256: exact (8-aligned) tile, no padding overhead for tiny batches.
    #  * B  > 256: large tiles (default up to 8192) but at least 2 grid tiles so
    #    the "parallel" axis can shard across both TensorCores on v7x.
    #  * No wrapper-side pad/concat; Pallas clips the ragged trailing block.
    if B <= 256:
        tb_eff = _round_up(B, 8)
    else:
        tb_eff = min(int(tb), _round_up(B, 256))
        tb_eff = min(tb_eff, _round_up(_cdiv(B, 2), 256))
    num_tiles = _cdiv(B, tb_eff)

    # --- BlockSpecs: stream activation tiles; params VMEM-resident ------------
    in_specs = [pl.BlockSpec((tb_eff, du), lambda i: (i, 0)),
                pl.BlockSpec((tb_eff, di), lambda i: (i, 0))]
    for p in flat_params:
        in_specs.append(pl.BlockSpec(p.shape, lambda i: (0, 0)))
    out_spec = pl.BlockSpec((tb_eff, 1), lambda i: (i, 0))

    # --- VMEM budget from the real footprint (double-buffered IO + params plus
    #     a few f32 activation temporaries), with headroom; safe on all gens. --
    in_itemsize = jnp.dtype(user_emb.dtype).itemsize
    io_bytes = tb_eff * (du + di) * in_itemsize + tb_eff * 4
    param_bytes = sum(int(p.size) * jnp.dtype(p.dtype).itemsize
                      for p in flat_params)
    widths = [du, di] + [int(w.shape[1])
                         for w, _ in list(user_params) + list(item_params)]
    act_bytes = 4 * tb_eff * max(widths) * 4
    vmem_limit = 2 * (io_bytes + param_bytes) + act_bytes + (4 << 20)
    vmem_limit = int(min(max(vmem_limit, 8 << 20), 48 << 20))

    out = pl.pallas_call(
        functools.partial(_dssm_two_tower_kernel, n_layers, matmul_dtype),
        out_shape=jax.ShapeDtypeStruct((B, 1), jnp.float32),
        grid=(num_tiles,),
        in_specs=in_specs,
        out_specs=out_spec,
        compiler_params=pltpu.CompilerParams(
            dimension_semantics=("parallel",),     # shard batch tiles over TCs
            vmem_limit_bytes=vmem_limit,
        ),
    )(user_emb, item_emb, *flat_params)

    return out[:, 0]


# --------------------------- plain-JAX reference ---------------------------

def dssm_score_ref(user_emb, item_emb, user_params, item_params):
    u = user_emb
    for w, b in user_params:
        u = jnp.tanh(u @ w + b)
    it = item_emb
    for w, b in item_params:
        it = jnp.tanh(it @ w + b)
    return jax.nn.sigmoid(jnp.sum(u * it, axis=1))


# --------------------------------- main ------------------------------------

if __name__ == "__main__":
    # model / data config (small, consistent with DSSM.__init__)
    vocabulary_size = 100
    user_num_fields = 3
    item_num_fields = 2
    embed_dim = 16
    hidden_dims = [32, 32]

    user_vec_dim = user_num_fields * embed_dim
    item_vec_dim = item_num_fields * embed_dim

    key = jax.random.PRNGKey(0)
    keys = jax.random.split(key, 16)

    # shared embedding table (FeaturesEmbedding)
    embed_table = jax.random.normal(keys[0], (vocabulary_size, embed_dim),
                                    dtype=jnp.float32) * 0.1

    # tower parameters (deterministic init)
    def make_mlp_params(kstart, in_dim, dims):
        params = []
        d = in_dim
        for li, h in enumerate(dims):
            kw, kb = jax.random.split(keys[kstart + li])
            w = jax.random.normal(kw, (d, h), dtype=jnp.float32) * 0.1
            b = jax.random.normal(kb, (h,), dtype=jnp.float32) * 0.01
            params.append((w, b))
            d = h
        return params

    user_params = make_mlp_params(1, user_vec_dim, hidden_dims)
    item_params = make_mlp_params(1 + len(hidden_dims), item_vec_dim, hidden_dims)

    def run_case(batch, kidx):
        x_user = jax.random.randint(keys[kidx], (batch, user_num_fields),
                                    0, vocabulary_size)
        x_item = jax.random.randint(keys[kidx + 1], (batch, item_num_fields),
                                    0, vocabulary_size)
        # embedding lookup + flatten (glue, plain JAX)
        user_emb = embed_table[x_user].reshape(batch, user_vec_dim)
        item_emb = embed_table[x_item].reshape(batch, item_vec_dim)

        score = jax.block_until_ready(
            dssm_score_pallas(user_emb, item_emb, user_params, item_params))
        score_ref = dssm_score_ref(user_emb, item_emb, user_params, item_params)
        assert score.shape == (batch,)
        assert jnp.allclose(score, score_ref, atol=2e-2, rtol=2e-2), (
            batch, score, score_ref)

    run_case(8, 10)     # tiny batch: single exact tile
    run_case(300, 12)   # multi-tile grid with a ragged trailing block

    print("KERNEL_OK")
</pallas_src>

<mosaic_0001>
module attributes {stable_mosaic.version = 11 : i64} {
  func.func @_dssm_two_tower_kernel(%arg0: i32, %arg1: memref<8x48xf32, #tpu.memory_space<vmem>>, %arg2: memref<8x32xf32, #tpu.memory_space<vmem>>, %arg3: memref<48x32xbf16, #tpu.memory_space<vmem>>, %arg4: memref<1x32xf32, #tpu.memory_space<vmem>>, %arg5: memref<32x32xbf16, #tpu.memory_space<vmem>>, %arg6: memref<1x32xf32, #tpu.memory_space<vmem>>, %arg7: memref<32x32xbf16, #tpu.memory_space<vmem>>, %arg8: memref<1x32xf32, #tpu.memory_space<vmem>>, %arg9: memref<32x32xbf16, #tpu.memory_space<vmem>>, %arg10: memref<1x32xf32, #tpu.memory_space<vmem>>, %arg11: memref<8x1xf32, #tpu.memory_space<vmem>>) attributes {dimension_semantics = [#tpu.dimension_semantics<parallel>], iteration_bounds = array<i64: 1>, scalar_prefetch = 0 : i64, scratch_operands = 0 : i64, tpu.core_type = #tpu.core_type<tc>, window_params = [{transform_indices = @transform_0, window_bounds = array<i64: 8, 48>}, {transform_indices = @transform_1, window_bounds = array<i64: 8, 32>}, {pipeline_mode = #tpu.pipeline_mode<synchronous>, transform_indices = @transform_2, window_bounds = array<i64: 48, 32>}, {pipeline_mode = #tpu.pipeline_mode<synchronous>, transform_indices = @transform_3, window_bounds = array<i64: 1, 32>}, {pipeline_mode = #tpu.pipeline_mode<synchronous>, transform_indices = @transform_4, window_bounds = array<i64: 32, 32>}, {pipeline_mode = #tpu.pipeline_mode<synchronous>, transform_indices = @transform_5, window_bounds = array<i64: 1, 32>}, {pipeline_mode = #tpu.pipeline_mode<synchronous>, transform_indices = @transform_6, window_bounds = array<i64: 32, 32>}, {pipeline_mode = #tpu.pipeline_mode<synchronous>, transform_indices = @transform_7, window_bounds = array<i64: 1, 32>}, {pipeline_mode = #tpu.pipeline_mode<synchronous>, transform_indices = @transform_8, window_bounds = array<i64: 32, 32>}, {pipeline_mode = #tpu.pipeline_mode<synchronous>, transform_indices = @transform_9, window_bounds = array<i64: 1, 32>}, {transform_indices = @transform_10, window_bounds = array<i64: 8, 1>}]} {
    %c0 = arith.constant 0 : index
    %c0_0 = arith.constant 0 : index
    %0 = vector.load %arg1[%c0, %c0_0] : memref<8x48xf32, #tpu.memory_space<vmem>>, vector<8x48xf32>
    %1 = arith.truncf %0 : vector<8x48xf32> to vector<8x48xbf16>
    %c0_1 = arith.constant 0 : index
    %c0_2 = arith.constant 0 : index
    %2 = vector.load %arg3[%c0_1, %c0_2] : memref<48x32xbf16, #tpu.memory_space<vmem>>, vector<48x32xbf16>
    %c0_3 = arith.constant 0 : index
    %c0_4 = arith.constant 0 : index
    %3 = vector.load %arg4[%c0_3, %c0_4] : memref<1x32xf32, #tpu.memory_space<vmem>>, vector<1x32xf32>
    %cst = arith.constant dense<0.000000e+00> : vector<8x32xf32>
    %4 = tpu.matmul %1, %2, %cst {dimension_numbers = #tpu.dot_dimension_numbers<[1], [0], [0], [1], [0, 0, 1, 1], [], []>} : vector<8x48xbf16>, vector<48x32xbf16>, vector<8x32xf32> -> vector<8x32xf32>
    %5 = vector.broadcast %3 : vector<1x32xf32> to vector<8x32xf32>
    %6 = arith.addf %4, %5 : vector<8x32xf32>
    %7 = math.tanh %6 : vector<8x32xf32>
    %8 = arith.truncf %7 : vector<8x32xf32> to vector<8x32xbf16>
    %c0_5 = arith.constant 0 : index
    %c0_6 = arith.constant 0 : index
    %9 = vector.load %arg5[%c0_5, %c0_6] : memref<32x32xbf16, #tpu.memory_space<vmem>>, vector<32x32xbf16>
    %c0_7 = arith.constant 0 : index
    %c0_8 = arith.constant 0 : index
    %10 = vector.load %arg6[%c0_7, %c0_8] : memref<1x32xf32, #tpu.memory_space<vmem>>, vector<1x32xf32>
    %cst_9 = arith.constant dense<0.000000e+00> : vector<8x32xf32>
    %11 = tpu.matmul %8, %9, %cst_9 {dimension_numbers = #tpu.dot_dimension_numbers<[1], [0], [0], [1], [0, 0, 1, 1], [], []>} : vector<8x32xbf16>, vector<32x32xbf16>, vector<8x32xf32> -> vector<8x32xf32>
    %12 = vector.broadcast %10 : vector<1x32xf32> to vector<8x32xf32>
    %13 = arith.addf %11, %12 : vector<8x32xf32>
    %14 = math.tanh %13 : vector<8x32xf32>
    %c0_10 = arith.constant 0 : index
    %c0_11 = arith.constant 0 : index
    %15 = vector.load %arg2[%c0_10, %c0_11] : memref<8x32xf32, #tpu.memory_space<vmem>>, vector<8x32xf32>
    %16 = arith.truncf %15 : vector<8x32xf32> to vector<8x32xbf16>
    %c0_12 = arith.constant 0 : index
    %c0_13 = arith.constant 0 : index
    %17 = vector.load %arg7[%c0_12, %c0_13] : memref<32x32xbf16, #tpu.memory_space<vmem>>, vector<32x32xbf16>
    %c0_14 = arith.constant 0 : index
    %c0_15 = arith.constant 0 : index
    %18 = vector.load %arg8[%c0_14, %c0_15] : memref<1x32xf32, #tpu.memory_space<vmem>>, vector<1x32xf32>
    %cst_16 = arith.constant dense<0.000000e+00> : vector<8x32xf32>
    %19 = tpu.matmul %16, %17, %cst_16 {dimension_numbers = #tpu.dot_dimension_numbers<[1], [0], [0], [1], [0, 0, 1, 1], [], []>} : vector<8x32xbf16>, vector<32x32xbf16>, vector<8x32xf32> -> vector<8x32xf32>
    %20 = vector.broadcast %18 : vector<1x32xf32> to vector<8x32xf32>
    %21 = arith.addf %19, %20 : vector<8x32xf32>
    %22 = math.tanh %21 : vector<8x32xf32>
    %23 = arith.truncf %22 : vector<8x32xf32> to vector<8x32xbf16>
    %c0_17 = arith.constant 0 : index
    %c0_18 = arith.constant 0 : index
    %24 = vector.load %arg9[%c0_17, %c0_18] : memref<32x32xbf16, #tpu.memory_space<vmem>>, vector<32x32xbf16>
    %c0_19 = arith.constant 0 : index
    %c0_20 = arith.constant 0 : index
    %25 = vector.load %arg10[%c0_19, %c0_20] : memref<1x32xf32, #tpu.memory_space<vmem>>, vector<1x32xf32>
    %cst_21 = arith.constant dense<0.000000e+00> : vector<8x32xf32>
    %26 = tpu.matmul %23, %24, %cst_21 {dimension_numbers = #tpu.dot_dimension_numbers<[1], [0], [0], [1], [0, 0, 1, 1], [], []>} : vector<8x32xbf16>, vector<32x32xbf16>, vector<8x32xf32> -> vector<8x32xf32>
    %27 = vector.broadcast %25 : vector<1x32xf32> to vector<8x32xf32>
    %28 = arith.addf %26, %27 : vector<8x32xf32>
    %29 = math.tanh %28 : vector<8x32xf32>
    %30 = arith.mulf %14, %29 : vector<8x32xf32>
    %cst_22 = arith.constant dense<0.000000e+00> : vector<8xf32>
    %31 = vector.multi_reduction <add>, %30, %cst_22 [1] : vector<8x32xf32> to vector<8xf32>
    %32 = vector.shape_cast %31 : vector<8xf32> to vector<8x1xf32>
    %33 = arith.negf %32 : vector<8x1xf32>
    %34 = math.exp %33 : vector<8x1xf32>
    %cst_23 = arith.constant 1.000000e+00 : f32
    %35 = vector.broadcast %cst_23 : f32 to vector<8x1xf32>
    %36 = arith.addf %35, %34 : vector<8x1xf32>
    %37 = arith.divf %35, %36 : vector<8x1xf32>
    %c0_24 = arith.constant 0 : index
    %c0_25 = arith.constant 0 : index
    %38 = vector.load %arg11[%c0_24, %c0_25] : memref<8x1xf32, #tpu.memory_space<vmem>>, vector<8x1xf32>
    tpu.vector_store %arg11[%c0_24, %c0_25], %37 {strides = array<i32>} : memref<8x1xf32, #tpu.memory_space<vmem>>, vector<8x1xf32>,
    return
  }
  func.func @transform_0(%arg0: i32) -> (i32, i32) {
    %c0_i32 = arith.constant 0 : i32
    %c0_i32_0 = arith.constant 0 : i32
    return %arg0, %c0_i32 : i32, i32
  }
  func.func @transform_1(%arg0: i32) -> (i32, i32) {
    %c0_i32 = arith.constant 0 : i32
    %c0_i32_0 = arith.constant 0 : i32
    return %arg0, %c0_i32 : i32, i32
  }
  func.func @transform_2(%arg0: i32) -> (i32, i32) {
    %c0_i32 = arith.constant 0 : i32
    %c0_i32_0 = arith.constant 0 : i32
    %c0_i32_1 = arith.constant 0 : i32
    return %c0_i32, %c0_i32_0 : i32, i32
  }
  func.func @transform_3(%arg0: i32) -> (i32, i32) {
    %c0_i32 = arith.constant 0 : i32
    %c0_i32_0 = arith.constant 0 : i32
    %c0_i32_1 = arith.constant 0 : i32
    return %c0_i32, %c0_i32_0 : i32, i32
  }
  func.func @transform_4(%arg0: i32) -> (i32, i32) {
    %c0_i32 = arith.constant 0 : i32
    %c0_i32_0 = arith.constant 0 : i32
    %c0_i32_1 = arith.constant 0 : i32
    return %c0_i32, %c0_i32_0 : i32, i32
  }
  func.func @transform_5(%arg0: i32) -> (i32, i32) {
    %c0_i32 = arith.constant 0 : i32
    %c0_i32_0 = arith.constant 0 : i32
    %c0_i32_1 = arith.constant 0 : i32
    return %c0_i32, %c0_i32_0 : i32, i32
  }
  func.func @transform_6(%arg0: i32) -> (i32, i32) {
    %c0_i32 = arith.constant 0 : i32
    %c0_i32_0 = arith.constant 0 : i32
    %c0_i32_1 = arith.constant 0 : i32
    return %c0_i32, %c0_i32_0 : i32, i32
  }
  func.func @transform_7(%arg0: i32) -> (i32, i32) {
    %c0_i32 = arith.constant 0 : i32
    %c0_i32_0 = arith.constant 0 : i32
    %c0_i32_1 = arith.constant 0 : i32
    return %c0_i32, %c0_i32_0 : i32, i32
  }
  func.func @transform_8(%arg0: i32) -> (i32, i32) {
    %c0_i32 = arith.constant 0 : i32
    %c0_i32_0 = arith.constant 0 : i32
    %c0_i32_1 = arith.constant 0 : i32
    return %c0_i32, %c0_i32_0 : i32, i32
  }
  func.func @transform_9(%arg0: i32) -> (i32, i32) {
    %c0_i32 = arith.constant 0 : i32
    %c0_i32_0 = arith.constant 0 : i32
    %c0_i32_1 = arith.constant 0 : i32
    return %c0_i32, %c0_i32_0 : i32, i32
  }
  func.func @transform_10(%arg0: i32) -> (i32, i32) {
    %c0_i32 = arith.constant 0 : i32
    %c0_i32_0 = arith.constant 0 : i32
    return %arg0, %c0_i32 : i32, i32
  }
}

</mosaic_0001>

<llo_original>
// kernel: tpu_custom_call.1
$region0: #{tpu_custom_call.1}
  #allocation0 [shape = 'u32[]', space=smem, size = 0x4, offset = 0x4, fixed_abs, tag = 'smem constant byte address 0x4 - core index']
  #allocation1 [shape = 'u32[72,128]{1,0:T(1,128)}', space=vmem, size = 0x9000, scoped, tag = 'internal scratch']
  %s0 = inlined_call_operand.vmem [shape: f32[8,48], index: 0, kind: input, shape index: {}]
  %s1 = inlined_call_operand.hbm [shape: f32[8,32], index: 1, kind: input, shape index: {}]
  %s2 = inlined_call_operand.vmem [shape: bf16[48,32], index: 2, kind: input, shape index: {}]
  %s3 = inlined_call_operand.vmem [shape: f32[1,32], index: 3, kind: input, shape index: {}]
  %s4 = inlined_call_operand.vmem [shape: bf16[32,32], index: 4, kind: input, shape index: {}]
  %s5 = inlined_call_operand.vmem [shape: f32[1,32], index: 5, kind: input, shape index: {}]
  %s6 = inlined_call_operand.vmem [shape: bf16[32,32], index: 6, kind: input, shape index: {}]
  %s7 = inlined_call_operand.vmem [shape: f32[1,32], index: 7, kind: input, shape index: {}]
  %s8 = inlined_call_operand.hbm [shape: bf16[32,32], index: 8, kind: input, shape index: {}]
  %s9 = inlined_call_operand.vmem [shape: f32[1,32], index: 9, kind: input, shape index: {}]
  %s10 = inlined_call_operand.vmem [shape: f32[8,1], index: 10, kind: output, shape index: {}]
  %s11 = sld [smem:[#allocation0]]
  $region58: #{tpu_custom_call.1} parent=0
    _
  %s13 = ssub.s32 1, %s11
  %s14 = scalar_select 0, %s13, %s11
  $region1: #{tpu_custom_call.1} parent=0
    #allocation2 [shape = 'u8[4096]{0}', space=vmem, size = 0x1000, scoped, tag = 'input window, operand 1, single buffered']
    #allocation3 [shape = 's32[1]{0}', space=sflag, size = 0x4, scoped, tag = 'scoped memory for tpu_custom_call.1']
    #allocation4 [shape = 'u8[8192]{0}', space=vmem, size = 0x2000, scoped, tag = 'input window, operand 8, single buffered']
    #allocation5 [shape = 's32[1]{0}', space=sflag, size = 0x4, scoped, tag = 'scoped memory for tpu_custom_call.1']
    %15 = vsyncpa [#allocation3], 0
    %16 = vsyncpa [#allocation5], 0
    // Predicated region
    $region2: #{tpu_custom_call.1} parent=1 // pred_check
      _
    $region3: #{tpu_custom_call.1} parent=1 // pred_check_branch
      %18 = sbr.rel (0) target = $region5
    $region4: #{tpu_custom_call.1} parent=1 // pred_region
      _
    $region5: #{tpu_custom_call.1} parent=1 // pred_fallthru
      _
    // Predicated region
    $region6: #{tpu_custom_call.1} parent=1 // pred_check
      _
    $region7: #{tpu_custom_call.1} parent=1 // pred_check_branch
      %20 = sbr.rel (0) target = $region9
    $region8: #{tpu_custom_call.1} parent=1 // pred_region
      %22 = vsyncadd [#allocation3], 0
      %s24 = sshll.u32 %s1, 4
      %s25 = int_to_ptr.hbm [resolvable:$true] %s24
      %s26 = sshll.u32 [#allocation2], 4
      %s27 = int_to_ptr.vmem [resolvable:$true] %s26
      %29 = dma.hbm_to_vmem [thread:$0]  %s25, 128, %s27, [#allocation3]
    $region9: #{tpu_custom_call.1} parent=1 // pred_fallthru
      _
    // Predicated region
    $region10: #{tpu_custom_call.1} parent=1 // pred_check
      _
    $region11: #{tpu_custom_call.1} parent=1 // pred_check_branch
      %31 = sbr.rel (0) target = $region13
    $region12: #{tpu_custom_call.1} parent=1 // pred_region
      _
    $region13: #{tpu_custom_call.1} parent=1 // pred_fallthru
      _
    // Predicated region
    $region14: #{tpu_custom_call.1} parent=1 // pred_check
      _
    $region15: #{tpu_custom_call.1} parent=1 // pred_check_branch
      %33 = sbr.rel (0) target = $region17
    $region16: #{tpu_custom_call.1} parent=1 // pred_region
      _
    $region17: #{tpu_custom_call.1} parent=1 // pred_fallthru
      _
    // Predicated region
    $region18: #{tpu_custom_call.1} parent=1 // pred_check
      _
    $region19: #{tpu_custom_call.1} parent=1 // pred_check_branch
      %35 = sbr.rel (0) target = $region21
    $region20: #{tpu_custom_call.1} parent=1 // pred_region
      _
    $region21: #{tpu_custom_call.1} parent=1 // pred_fallthru
      _
    // Predicated region
    $region22: #{tpu_custom_call.1} parent=1 // pred_check
      _
    $region23: #{tpu_custom_call.1} parent=1 // pred_check_branch
      %37 = sbr.rel (0) target = $region25
    $region24: #{tpu_custom_call.1} parent=1 // pred_region
      _
    $region25: #{tpu_custom_call.1} parent=1 // pred_fallthru
      _
    // Predicated region
    $region26: #{tpu_custom_call.1} parent=1 // pred_check
      _
    $region27: #{tpu_custom_call.1} parent=1 // pred_check_branch
      %39 = sbr.rel (0) target = $region29
    $region28: #{tpu_custom_call.1} parent=1 // pred_region
      _
    $region29: #{tpu_custom_call.1} parent=1 // pred_fallthru
      _
    // Predicated region
    $region30: #{tpu_custom_call.1} parent=1 // pred_check
      _
    $region31: #{tpu_custom_call.1} parent=1 // pred_check_branch
      %41 = sbr.rel (0) target = $region33
    $region32: #{tpu_custom_call.1} parent=1 // pred_region
      _
    $region33: #{tpu_custom_call.1} parent=1 // pred_fallthru
      _
    // Predicated region
    $region34: #{tpu_custom_call.1} parent=1 // pred_check
      _
    $region35: #{tpu_custom_call.1} parent=1 // pred_check_branch
      %43 = sbr.rel (0) target = $region37
    $region36: #{tpu_custom_call.1} parent=1 // pred_region
      %45 = vsyncadd [#allocation5], 0
      %s46 = sshll.u32 %s8, 4
      %s47 = int_to_ptr.hbm [resolvable:$true] %s46
      %s48 = sshll.u32 [#allocation4], 4
      %s49 = int_to_ptr.vmem [resolvable:$true] %s48
      %54 = dma.hbm_to_vmem [thread:$0]  %s47, 256, %s49, [#allocation5], 64, 64, 4
    $region37: #{tpu_custom_call.1} parent=1 // pred_fallthru
      _
    // Predicated region
    $region38: #{tpu_custom_call.1} parent=1 // pred_check
      _
    $region39: #{tpu_custom_call.1} parent=1 // pred_check_branch
      %56 = sbr.rel (0) target = $region41
    $region40: #{tpu_custom_call.1} parent=1 // pred_region
      _
    $region41: #{tpu_custom_call.1} parent=1 // pred_fallthru
      _
    // Predicated region
    $region42: #{tpu_custom_call.1} parent=1 // pred_check
      _
    $region43: #{tpu_custom_call.1} parent=1 // pred_check_branch
      %58 = sbr.rel (0) target = $region45
    $region44: #{tpu_custom_call.1} parent=1 // pred_region
      %60 = dma.done [#allocation3], 128
    $region45: #{tpu_custom_call.1} parent=1 // pred_fallthru
      _
    // Predicated region
    $region46: #{tpu_custom_call.1} parent=1 // pred_check
      _
    $region47: #{tpu_custom_call.1} parent=1 // pred_check_branch
      %62 = sbr.rel (0) target = $region49
    $region48: #{tpu_custom_call.1} parent=1 // pred_region
      %64 = dma.done [#allocation5], 256
    $region49: #{tpu_custom_call.1} parent=1 // pred_fallthru
      _
    %v66 = vld [vmem:[%s0] sm:$0xff]
    %v67 = vpack.c.bf16 %v66, %v66
    %v68 = vld [vmem:[%s2] sm:$0xf]
    %v69 = vld [vmem:[%s2 + $0x4] sm:$0xf]
    %v70 = vld [vmem:[%s2 + $0x8] sm:$0xf]
    %v71 = vld [vmem:[%s2 + $0xc] sm:$0xf]
    %v72 = vld [vmem:[%s2 + $0x10] sm:$0xf]
    %v73 = vld [vmem:[%s2 + $0x14] sm:$0xf]
    %v74 = vld [vmem:[%s3] sm:$0x1]
    %v76 = vperm.slane %v74, 0
    %v84 = vunpack.c.l.b16 %v68
    %v85 = vunpack.c.l.b16 %v69
    %v86 = vunpack.c.l.b16 %v70
    %v87 = vunpack.c.l.b16 %v71
    %v88 = vunpack.c.l.b16 %v72
    %v89 = vunpack.c.l.b16 %v73
    %v90 = vpack.c.b16 %v85, %v84
    %v91 = vpack.c.b16 %v87, %v86
    %v92 = vpack.c.b16 %v89, %v88
    %vm96 = vcmask 392192
    %v98 = vsel %vm96, %v67, 0
    %100 = vmatpush.bf16.msra.mxu0 0
    %101 = vmatpush.bf16.msra.mxu0 0
    %102 = vmatpush.bf16.msra.mxu0 0
    %103 = vmatpush.bf16.msra.mxu0 0
    %104 = vmatpush.bf16.msra.mxu0 0
    %105 = vmatpush.bf16.msra.mxu0 %v92
    %106 = vmatpush.bf16.msra.mxu0 %v91
    %107 = vmatpush.bf16.msra.mxu0 %v90
    %108 = vmatmul.bf16.gmra.mxu0 %v98
    %v109 = vpop.f32.mrf.mxu0
    %v110 = vadd.f32 %v76, %v109
    %v111 = vpop.f32.mrf.mxu0
    %112 = vdwg.mxu0
    %v113 = vtanh.pop %v110
    %v114 = vpack.c.bf16 %v113, %v113
    %v115 = vld [vmem:[%s4] sm:$0xf]
    %v116 = vld [vmem:[%s4 + $0x4] sm:$0xf]
    %v117 = vld [vmem:[%s4 + $0x8] sm:$0xf]
    %v118 = vld [vmem:[%s4 + $0xc] sm:$0xf]
    %v119 = vld [vmem:[%s5] sm:$0x1]
    %v121 = vperm.slane %v119, 0
    %v127 = vunpack.c.l.b16 %v115
    %v128 = vunpack.c.l.b16 %v116
    %v129 = vunpack.c.l.b16 %v117
    %v130 = vunpack.c.l.b16 %v118
    %v131 = vpack.c.b16 %v128, %v127
    %v132 = vpack.c.b16 %v130, %v129
    %vm135 = vcmask 261120
    %v137 = vsel %vm135, %v114, 0
    %139 = vmatpush.bf16.msra.mxu0 0
    %140 = vmatpush.bf16.msra.mxu0 0
    %141 = vmatpush.bf16.msra.mxu0 0
    %142 = vmatpush.bf16.msra.mxu0 0
    %143 = vmatpush.bf16.msra.mxu0 0
    %144 = vmatpush.bf16.msra.mxu0 0
    %145 = vmatpush.bf16.msra.mxu0 %v132
    %146 = vmatpush.bf16.msra.mxu0 %v131
    %147 = vmatmul.bf16.gmra.mxu0 %v137
    %v148 = vpop.f32.mrf.mxu0
    %v149 = vadd.f32 %v121, %v148
    %v150 = vpop.f32.mrf.mxu0
    %151 = vdwg.mxu0
    %v152 = vtanh.pop %v149
    %v153 = vld [vmem:[#allocation2] sm:$0xff]
    %v154 = vpack.c.bf16 %v153, %v153
    %v155 = vld [vmem:[%s6] sm:$0xf]
    %v156 = vld [vmem:[%s6 + $0x4] sm:$0xf]
    %v157 = vld [vmem:[%s6 + $0x8] sm:$0xf]
    %v158 = vld [vmem:[%s6 + $0xc] sm:$0xf]
    %v159 = vld [vmem:[%s7] sm:$0x1]
    %v161 = vperm.slane %v159, 0
    %v167 = vunpack.c.l.b16 %v155
    %v168 = vunpack.c.l.b16 %v156
    %v169 = vunpack.c.l.b16 %v157
    %v170 = vunpack.c.l.b16 %v158
    %v171 = vpack.c.b16 %v168, %v167
    %v172 = vpack.c.b16 %v170, %v169
    %v176 = vsel %vm135, %v154, 0
    %178 = vmatpush.bf16.msra.mxu0 0
    %179 = vmatpush.bf16.msra.mxu0 0
    %180 = vmatpush.bf16.msra.mxu0 0
    %181 = vmatpush.bf16.msra.mxu0 0
    %182 = vmatpush.bf16.msra.mxu0 0
    %183 = vmatpush.bf16.msra.mxu0 0
    %184 = vmatpush.bf16.msra.mxu0 %v172
    %185 = vmatpush.bf16.msra.mxu0 %v171
    %186 = vmatmul.bf16.gmra.mxu0 %v176
    %v187 = vpop.f32.mrf.mxu0
    %v188 = vadd.f32 %v161, %v187
    %v189 = vpop.f32.mrf.mxu0
    %190 = vdwg.mxu0
    %v191 = vtanh.pop %v188
    %v192 = vpack.c.bf16 %v191, %v191
    %v193 = vld [vmem:[#allocation4] sm:$0xf]
    %v194 = vld [vmem:[#allocation4 + $0x4] sm:$0xf]
    %v195 = vld [vmem:[#allocation4 + $0x8] sm:$0xf]
    %v196 = vld [vmem:[#allocation4 + $0xc] sm:$0xf]
    %v197 = vld [vmem:[%s9] sm:$0x1]
    %v199 = vperm.slane %v197, 0
    %v205 = vunpack.c.l.b16 %v193
    %v206 = vunpack.c.l.b16 %v194
    %v207 = vunpack.c.l.b16 %v195
    %v208 = vunpack.c.l.b16 %v196
    %v209 = vpack.c.b16 %v206, %v205
    %v210 = vpack.c.b16 %v208, %v207
    %v214 = vsel %vm135, %v192, 0
    %216 = vmatpush.bf16.msra.mxu0 0
    %217 = vmatpush.bf16.msra.mxu0 0
    %218 = vmatpush.bf16.msra.mxu0 0
    %219 = vmatpush.bf16.msra.mxu0 0
    %220 = vmatpush.bf16.msra.mxu0 0
    %221 = vmatpush.bf16.msra.mxu0 0
    %222 = vmatpush.bf16.msra.mxu0 %v210
    %223 = vmatpush.bf16.msra.mxu0 %v209
    %224 = vmatmul.bf16.gmra.mxu0 %v214
    %v225 = vpop.f32.mrf.mxu0
    %v226 = vadd.f32 %v199, %v225
    %v227 = vpop.f32.mrf.mxu0
    %228 = vdwg.mxu0
    %v229 = vtanh.pop %v226
    %v230 = vmul.f32 %v152, %v229
    %v231 = vsel %vm135, %v230, 0.0
    %232 = vadd.xlane.f32.xlu0 %v231
    %v233 = vpop.xlane.xlu0 %232
    %v234 = vxor.u32 %v233, 2147483648
    %v235 = vmul.f32 %v234, 1.442695
    %v236 = vpow.pop %v235
    %v237 = vadd.f32 %v236, 1.0
    %v238 = vrcp.pop %v237
    %v239 = vmul.f32 %v237, %v238
    %v240 = vsub.f32 1.0, %v239
    %v241 = vmul.f32 %v238, %v240
    %v242 = vadd.f32 %v238, %v241
    %vm243 = vweird.f32 %v237
    %vm244 = vweird.f32 %v238
    %vm245 = vmor %vm243, %vm244
    %v246 = vsel %vm245, %v238, %v242
    %v247 = vand.u32 2147483647, %v237
    %vm248 = vcmp.eq.f32.partialorder %v247, 8.507059e+37
    %v249 = vand.u32 %v237, 2147483648
    %v250 = vor.u32 1.1754944e-38, %v249
    %v251 = vsel %vm248, %v250, %v246
    %v252 = vmul.f32 1.0, %v251
    %vm253 = vcmask 7168
    %254 = vst.msk [vmem:[%s10] sm:$0xff] %vm253, %v252
    // Predicated region
    $region50: #{tpu_custom_call.1} parent=1 // pred_check
      _
    $region51: #{tpu_custom_call.1} parent=1 // pred_check_branch
      %256 = sbr.rel (0) target = $region53
    $region52: #{tpu_custom_call.1} parent=1 // pred_region
      _
    $region53: #{tpu_custom_call.1} parent=1 // pred_fallthru
      _
    // Predicated region
    $region54: #{tpu_custom_call.1} parent=1 // pred_check
      _
    $region55: #{tpu_custom_call.1} parent=1 // pred_check_branch
      %258 = sbr.rel (0) target = $region57
    $region56: #{tpu_custom_call.1} parent=1 // pred_region
      _
    $region57: #{tpu_custom_call.1} parent=1 // pred_fallthru
      _
    %259 = vsyncpa [#allocation3], 1
    %260 = vsyncpa [#allocation5], 1

</llo_original>
